<compile_context>
chip_gen: v5e
topology: v5e:2x2
jax: 0.10.0
libtpu: 0.0.40
codegen_flags: <defaults>
</compile_context>

<pallas_src>
import math

import jax
import jax.numpy as jnp
from jax.experimental import pallas as pl
from jax.experimental.pallas import tpu as pltpu


def _pick_batch_tile(B, per_b_out_bytes, *, target_bytes=4 << 20,
                     min_tile_bytes=1 << 20, unroll_cap=32):
    """How many batch elements to fold into one grid step.

    Aims for ~target_bytes of output per step (amortises the ~0.35 us per-step
    overhead), bounds the in-kernel unroll, and -- when it does not shrink the
    tile below min_tile_bytes -- keeps >= 2 grid steps so both v7x TensorCores
    get work (a no-op on v5e/v6e which have a single TC).
    """
    bt = max(1, min(B, target_bytes // max(per_b_out_bytes, 1), unroll_cap))
    if bt >= B and B > 1:
        half = (B + 1) // 2
        if half * per_b_out_bytes >= min_tile_bytes:
            bt = half
    # Prefer a divisor of B close to bt (avoids a ragged final block); a ragged
    # final block is still handled correctly by the cdiv grid + masked writeback.
    for cand in range(bt, max(bt // 2, 1) - 1, -1):
        if B % cand == 0:
            return cand
    return bt


def token_embedding_kernel(x_ref, w_ref, o_ref):
    # x_ref: [Bt, L, C]  batch-block of input sequences (whole L resident, so the
    #                    circular wrap is exact -- no halo needed)
    # w_ref: [3C, D]     fused per-tap weights, tap-major rows
    # o_ref: [Bt, L, D]  batch-block of the output (written at true width D)
    bt, L, _ = x_ref.shape
    w = w_ref[...]                                        # hoisted: reused by every i
    for i in range(bt):                                   # static unroll (bt <= 32)
        x = x_ref[i]                                      # [L, C]
        x_m1 = pltpu.roll(x, shift=1, axis=0)             # x[(t-1) mod L]
        x_p1 = pltpu.roll(x, shift=L - 1, axis=0)         # x[(t+1) mod L]
        xcat = jnp.concatenate([x_m1, x, x_p1], axis=-1)  # [L, 3C]
        o_ref[i] = jnp.dot(
            xcat, w, preferred_element_type=jnp.float32
        ).astype(o_ref.dtype)


def token_embedding(x, w_torch, *, out_dtype=None, batch_tile_bytes=4 << 20):
    """x: [B, L, c_in], w_torch: [d_model, c_in, 3] (PyTorch Conv1d layout).

    Returns y: [B, L, d_model] with dtype out_dtype (default: x.dtype).
    MXU accumulation is always f32.
    """
    B, L, C = x.shape
    D = w_torch.shape[0]
    out_dtype = x.dtype if out_dtype is None else out_dtype

    # Fused weight: torch [D, C, 3] -> [3, C, D] -> [3C, D]; row order matches
    # xcat = concat([x_{t-1}, x_t, x_{t+1}], axis=-1).  No lane padding.
    w = jnp.transpose(w_torch, (2, 1, 0)).reshape(3 * C, D).astype(x.dtype)

    in_it = jnp.dtype(x.dtype).itemsize
    w_it = jnp.dtype(w.dtype).itemsize
    out_it = jnp.dtype(out_dtype).itemsize

    per_b_out = L * D * out_it
    Bt = _pick_batch_tile(B, per_b_out, target_bytes=batch_tile_bytes)
    grid = (pl.cdiv(B, Bt),)

    # Actual working set: double-buffered in/out blocks + weights + per-iteration
    # intermediates, with headroom -- capped well below v7x's 64 MiB physical VMEM.
    need = (2 * Bt * L * C * in_it
            + 2 * 3 * C * D * w_it
            + 2 * Bt * L * D * out_it
            + 2 * (L * 3 * C * in_it + L * D * 4 + L * D * out_it))
    vmem_limit = int(min(48 << 20, max(16 << 20, (3 * need) // 2)))
    # TODO(synk): sequences too long for a single (1, L, D) block to fit VMEM would
    # need an L-tiled variant with a 1-row circular halo; not needed for this module.

    cost = pl.CostEstimate(
        flops=2 * B * L * 3 * C * D,
        transcendentals=0,
        bytes_accessed=B * L * C * in_it + 3 * C * D * w_it + B * L * D * out_it,
    )

    return pl.pallas_call(
        token_embedding_kernel,
        out_shape=jax.ShapeDtypeStruct((B, L, D), out_dtype),
        grid_spec=pltpu.PrefetchScalarGridSpec(
            num_scalar_prefetch=0,
            grid=grid,
            in_specs=[
                pl.BlockSpec((Bt, L, C), lambda b: (b, 0, 0)),
                # Constant block index across the whole grid -> fetched once.
                pl.BlockSpec((3 * C, D), lambda b: (0, 0)),
            ],
            out_specs=pl.BlockSpec((Bt, L, D), lambda b: (b, 0, 0)),
        ),
        compiler_params=pltpu.CompilerParams(
            dimension_semantics=("parallel",),
            vmem_limit_bytes=vmem_limit,
        ),
        cost_estimate=cost,
    )(x, w)


def reference(x, w_torch):
    """Pure-JAX reference of the circular conv (channels-last)."""
    w = jnp.transpose(w_torch, (2, 1, 0))            # [3, C, D]
    x_m1 = jnp.roll(x, 1, axis=1)
    x_p1 = jnp.roll(x, -1, axis=1)
    return (jnp.einsum("blc,cd->bld", x_m1, w[0])
            + jnp.einsum("blc,cd->bld", x, w[1])
            + jnp.einsum("blc,cd->bld", x_p1, w[2]))


if __name__ == "__main__":
    B, L, c_in, d_model = 2, 16, 4, 32

    key = jax.random.PRNGKey(0)
    kx, kw = jax.random.split(key)

    # input: [B, L, c_in]  (what the PyTorch module's forward receives)
    x = jax.random.normal(kx, (B, L, c_in), dtype=jnp.float32)

    # Deterministic kaiming_normal_(mode='fan_in', nonlinearity='leaky_relu') init
    # for a Conv1d weight of shape [d_model, c_in, 3].
    fan_in = c_in * 3
    gain = math.sqrt(2.0 / (1.0 + 0.01 ** 2))        # leaky_relu default slope 0.01
    std = gain / math.sqrt(fan_in)
    w_torch = std * jax.random.normal(kw, (d_model, c_in, 3), dtype=jnp.float32)

    # f32 path (bit-faithful vs the PyTorch module; f32 MXU accumulation).
    y = jax.block_until_ready(token_embedding(x, w_torch))
    y_ref = reference(x, w_torch)
    assert y.shape == (B, L, d_model)
    assert y.dtype == jnp.float32
    assert jnp.allclose(y, y_ref, atol=1e-5, rtol=1e-5)

    # bf16 I/O path (halves the dominant HBM output traffic); accumulation stays f32.
    x_bf16 = x.astype(jnp.bfloat16)
    y_bf16 = jax.block_until_ready(token_embedding(x_bf16, w_torch))
    y_bf16_ref = reference(x_bf16.astype(jnp.float32),
                           w_torch.astype(jnp.bfloat16).astype(jnp.float32))
    assert y_bf16.dtype == jnp.bfloat16
    assert jnp.allclose(y_bf16.astype(jnp.float32), y_bf16_ref, atol=3e-2, rtol=3e-2)

    print("KERNEL_OK")
</pallas_src>

<mosaic_0001>
module attributes {stable_mosaic.version = 11 : i64} {
  func.func @token_embedding_kernel(%arg0: i32, %arg1: memref<2x16x4xf32, #tpu.memory_space<vmem>>, %arg2: memref<12x32xf32, #tpu.memory_space<vmem>>, %arg3: memref<2x16x32xf32, #tpu.memory_space<vmem>>) attributes {dimension_semantics = [#tpu.dimension_semantics<parallel>], iteration_bounds = array<i64: 1>, scalar_prefetch = 0 : i64, scratch_operands = 0 : i64, tpu.core_type = #tpu.core_type<tc>, window_params = [{transform_indices = @transform_0, window_bounds = array<i64: 2, 16, 4>}, {pipeline_mode = #tpu.pipeline_mode<synchronous>, transform_indices = @transform_1, window_bounds = array<i64: 12, 32>}, {transform_indices = @transform_2, window_bounds = array<i64: 2, 16, 32>}]} {
    %c0 = arith.constant 0 : index
    %c0_0 = arith.constant 0 : index
    %0 = vector.load %arg2[%c0, %c0_0] : memref<12x32xf32, #tpu.memory_space<vmem>>, vector<12x32xf32>
    %c0_1 = arith.constant 0 : index
    %c0_2 = arith.constant 0 : index
    %c0_3 = arith.constant 0 : index
    %1 = vector.load %arg1[%c0_1, %c0_2, %c0_3] : memref<2x16x4xf32, #tpu.memory_space<vmem>>, vector<1x16x4xf32>
    %2 = vector.shape_cast %1 : vector<1x16x4xf32> to vector<16x4xf32>
    %c1_i32 = arith.constant 1 : i32
    %3 = tpu.dynamic_rotate %2 by %c1_i32 dim 0 : vector<16x4xf32>, i32 -> vector<16x4xf32>
    %c15_i32 = arith.constant 15 : i32
    %4 = tpu.dynamic_rotate %2 by %c15_i32 dim 0 : vector<16x4xf32>, i32 -> vector<16x4xf32>
    %5 = tpu.concatenate %3, %2, %4 in 1 : vector<16x4xf32>, vector<16x4xf32>, vector<16x4xf32> -> vector<16x12xf32>
    %cst = arith.constant dense<0.000000e+00> : vector<16x32xf32>
    %6 = tpu.matmul %5, %0, %cst {dimension_numbers = #tpu.dot_dimension_numbers<[1], [0], [0], [1], [0, 0, 1, 1], [], []>} : vector<16x12xf32>, vector<12x32xf32>, vector<16x32xf32> -> vector<16x32xf32>
    %c0_4 = arith.constant 0 : index
    %c0_5 = arith.constant 0 : index
    %c0_6 = arith.constant 0 : index
    %7 = vector.load %arg3[%c0_4, %c0_5, %c0_6] : memref<2x16x32xf32, #tpu.memory_space<vmem>>, vector<1x16x32xf32>
    %8 = vector.shape_cast %7 : vector<1x16x32xf32> to vector<16x32xf32>
    %9 = vector.shape_cast %6 : vector<16x32xf32> to vector<1x16x32xf32>
    tpu.vector_store %arg3[%c0_4, %c0_5, %c0_6], %9 {strides = array<i32>} : memref<2x16x32xf32, #tpu.memory_space<vmem>>, vector<1x16x32xf32>,
    %c1 = arith.constant 1 : index
    %c0_7 = arith.constant 0 : index
    %c0_8 = arith.constant 0 : index
    %10 = vector.load %arg1[%c1, %c0_7, %c0_8] : memref<2x16x4xf32, #tpu.memory_space<vmem>>, vector<1x16x4xf32>
    %11 = vector.shape_cast %10 : vector<1x16x4xf32> to vector<16x4xf32>
    %c1_i32_9 = arith.constant 1 : i32
    %12 = tpu.dynamic_rotate %11 by %c1_i32_9 dim 0 : vector<16x4xf32>, i32 -> vector<16x4xf32>
    %c15_i32_10 = arith.constant 15 : i32
    %13 = tpu.dynamic_rotate %11 by %c15_i32_10 dim 0 : vector<16x4xf32>, i32 -> vector<16x4xf32>
    %14 = tpu.concatenate %12, %11, %13 in 1 : vector<16x4xf32>, vector<16x4xf32>, vector<16x4xf32> -> vector<16x12xf32>
    %cst_11 = arith.constant dense<0.000000e+00> : vector<16x32xf32>
    %15 = tpu.matmul %14, %0, %cst_11 {dimension_numbers = #tpu.dot_dimension_numbers<[1], [0], [0], [1], [0, 0, 1, 1], [], []>} : vector<16x12xf32>, vector<12x32xf32>, vector<16x32xf32> -> vector<16x32xf32>
    %c1_12 = arith.constant 1 : index
    %c0_13 = arith.constant 0 : index
    %c0_14 = arith.constant 0 : index
    %16 = vector.load %arg3[%c1_12, %c0_13, %c0_14] : memref<2x16x32xf32, #tpu.memory_space<vmem>>, vector<1x16x32xf32>
    %17 = vector.shape_cast %16 : vector<1x16x32xf32> to vector<16x32xf32>
    %18 = vector.shape_cast %15 : vector<16x32xf32> to vector<1x16x32xf32>
    tpu.vector_store %arg3[%c1_12, %c0_13, %c0_14], %18 {strides = array<i32>} : memref<2x16x32xf32, #tpu.memory_space<vmem>>, vector<1x16x32xf32>,
    return
  }
  func.func @transform_0(%arg0: i32) -> (i32, i32, i32) {
    %c0_i32 = arith.constant 0 : i32
    %c0_i32_0 = arith.constant 0 : i32
    %c0_i32_1 = arith.constant 0 : i32
    return %arg0, %c0_i32, %c0_i32_0 : i32, i32, i32
  }
  func.func @transform_1(%arg0: i32) -> (i32, i32) {
    %c0_i32 = arith.constant 0 : i32
    %c0_i32_0 = arith.constant 0 : i32
    %c0_i32_1 = arith.constant 0 : i32
    return %c0_i32, %c0_i32_0 : i32, i32
  }
  func.func @transform_2(%arg0: i32) -> (i32, i32, i32) {
    %c0_i32 = arith.constant 0 : i32
    %c0_i32_0 = arith.constant 0 : i32
    %c0_i32_1 = arith.constant 0 : i32
    return %arg0, %c0_i32, %c0_i32_0 : i32, i32, i32
  }
}

</mosaic_0001>

<llo_original>
// kernel: tpu_custom_call.1
$region0: #{tpu_custom_call.1}
  #allocation0 [shape = 'u32[]', space=smem, size = 0x4, offset = 0x4, fixed_abs, tag = 'smem constant byte address 0x4 - core index']
  #allocation1 [shape = 'u32[72,128]{1,0:T(1,128)}', space=vmem, size = 0x9000, scoped, tag = 'internal scratch']
  %s0 = inlined_call_operand.vmem [shape: f32[2,16,4], index: 0, kind: input, shape index: {}]
  %s1 = inlined_call_operand.vmem [shape: f32[12,32], index: 1, kind: input, shape index: {}]
  %s2 = inlined_call_operand.hbm [shape: f32[2,16,32], index: 2, kind: output, shape index: {}]
  %s3 = sld [smem:[#allocation0]]
  $region18: #{tpu_custom_call.1} parent=0
    _
  %s5 = ssub.s32 1, %s3
  %s6 = scalar_select 0, %s5, %s3
  $region1: #{tpu_custom_call.1} parent=0
    #allocation2 [shape = 'u8[16384]{0}', space=vmem, size = 0x4000, scoped, tag = 'output window, operand 0, single buffered']
    #allocation3 [shape = 's32[1]{0}', space=sflag, size = 0x4, scoped, tag = 'scoped memory for tpu_custom_call.1']
    %7 = vsyncpa [#allocation3], 0
    // Predicated region
    $region2: #{tpu_custom_call.1} parent=1 // pred_check
      _
    $region3: #{tpu_custom_call.1} parent=1 // pred_check_branch
      %9 = sbr.rel (0) target = $region5
    $region4: #{tpu_custom_call.1} parent=1 // pred_region
      _
    $region5: #{tpu_custom_call.1} parent=1 // pred_fallthru
      _
    // Predicated region
    $region6: #{tpu_custom_call.1} parent=1 // pred_check
      _
    $region7: #{tpu_custom_call.1} parent=1 // pred_check_branch
      %11 = sbr.rel (0) target = $region9
    $region8: #{tpu_custom_call.1} parent=1 // pred_region
      _
    $region9: #{tpu_custom_call.1} parent=1 // pred_fallthru
      _
    %v12 = vld [vmem:[%s1] sm:$0xff]
    %v13 = vld [vmem:[%s1 + $0x8] sm:$0xf]
    %v14 = vld [vmem:[%s0] sm:$0xff]
    %v15 = vld [vmem:[%s0 + $0x8] sm:$0xff]
    %v16 = vrot.slane %v14, 7
    %v17 = vrot.slane %v15, 7
    %v18 = vlaneseq
    %v19 = vshrl.u32 %v18, 7
    %vm20 = vcmp.lt.s32.totalorder %v19, 1
    %v21 = vsel %vm20, %v16, %v17
    %v22 = vsel %vm20, %v17, %v16
    %v23 = vrot.slane %v14, 1
    %v24 = vrot.slane %v15, 1
    %vm25 = vcmp.lt.s32.totalorder %v19, 7
    %v26 = vsel %vm25, %v23, %v24
    %v27 = vsel %vm25, %v24, %v23
    %30 = vrot.lane.b32.xlu0 %v14, 4
    %v31 = vpop.permute.xlu0 %30
    %32 = vrot.lane.b32.xlu0 %v15, 4
    %v33 = vpop.permute.xlu0 %32
    %38 = vrot.lane.b32.xlu0 %v26, 8
    %v39 = vpop.permute.xlu0 %38
    %40 = vrot.lane.b32.xlu0 %v27, 8
    %v41 = vpop.permute.xlu0 %40
    %vm44 = vcmask 31744
    %v45 = vsel %vm44, %v22, %v31
    %v46 = vsel %vm44, %v21, %v33
    %vm47 = vcmask 64512
    %v48 = vsel %vm47, %v45, %v39
    %v49 = vsel %vm47, %v46, %v41
    %vm50 = vcmask 97280
    %v52 = vsel %vm50, %v48, 0
    %v55 = vsel %vm50, %v49, 0
    %vm57 = vcmask 1043456
    %v59 = vsel %vm57, %v13, 0
    %61 = vmatpush.msra.mxu0 0.0
    %62 = vmatpush.msra.mxu0 0.0
    %63 = vmatpush.msra.mxu0 0.0
    %64 = vmatpush.msra.mxu0 0.0
    %65 = vmatpush.msra.mxu0 0.0
    %66 = vmatpush.msra.mxu0 0.0
    %67 = vmatpush.msra.mxu0 0.0
    %68 = vmatpush.msra.mxu0 0.0
    %69 = vmatpush.msra.mxu0 0.0
    %70 = vmatpush.msra.mxu0 0.0
    %71 = vmatpush.msra.mxu0 0.0
    %72 = vmatpush.msra.mxu0 0.0
    %73 = vmatpush.msra.mxu0 0.0
    %74 = vmatpush.msra.mxu0 0.0
    %75 = vmatpush.msra.mxu0 %v59
    %76 = vmatpush.msra.mxu0 %v12
    %77 = vmatmul.f32.gmra.mxu0 %v52
    %v78 = vpop.f32.mrf.mxu0
    %v79 = vadd.f32 0.0, %v78
    %80 = vmatmul.f32.gmra.mxu0 %v55
    %v81 = vpop.f32.mrf.mxu0
    %v82 = vadd.f32 0.0, %v81
    %83 = vdwg.mxu0
    %vm84 = vcmask 261120
    %85 = vst.msk [vmem:[#allocation2] sm:$0xff] %vm84, %v79
    %86 = vst.msk [vmem:[#allocation2 + $0x8] sm:$0xff] %vm84, %v82
    %s87 = scalar_lea.vmem %s0, 16
    %v88 = vld [vmem:[%s87] sm:$0xff]
    %v89 = vld [vmem:[%s87 + $0x8] sm:$0xff]
    %v90 = vrot.slane %v88, 7
    %v91 = vrot.slane %v89, 7
    %v92 = vsel %vm20, %v90, %v91
    %v93 = vsel %vm20, %v91, %v90
    %v94 = vrot.slane %v88, 1
    %v95 = vrot.slane %v89, 1
    %v96 = vsel %vm25, %v94, %v95
    %v97 = vsel %vm25, %v95, %v94
    %100 = vrot.lane.b32.xlu0 %v88, 4
    %v101 = vpop.permute.xlu0 %100
    %102 = vrot.lane.b32.xlu0 %v89, 4
    %v103 = vpop.permute.xlu0 %102
    %108 = vrot.lane.b32.xlu0 %v96, 8
    %v109 = vpop.permute.xlu0 %108
    %110 = vrot.lane.b32.xlu0 %v97, 8
    %v111 = vpop.permute.xlu0 %110
    %v114 = vsel %vm44, %v93, %v101
    %v115 = vsel %vm44, %v92, %v103
    %v116 = vsel %vm47, %v114, %v109
    %v117 = vsel %vm47, %v115, %v111
    %v119 = vsel %vm50, %v116, 0
    %v122 = vsel %vm50, %v117, 0
    %124 = vmatpush.msra.mxu0 0.0
    %125 = vmatpush.msra.mxu0 0.0
    %126 = vmatpush.msra.mxu0 0.0
    %127 = vmatpush.msra.mxu0 0.0
    %128 = vmatpush.msra.mxu0 0.0
    %129 = vmatpush.msra.mxu0 0.0
    %130 = vmatpush.msra.mxu0 0.0
    %131 = vmatpush.msra.mxu0 0.0
    %132 = vmatpush.msra.mxu0 0.0
    %133 = vmatpush.msra.mxu0 0.0
    %134 = vmatpush.msra.mxu0 0.0
    %135 = vmatpush.msra.mxu0 0.0
    %136 = vmatpush.msra.mxu0 0.0
    %137 = vmatpush.msra.mxu0 0.0
    %138 = vmatpush.msra.mxu0 %v59
    %139 = vmatpush.msra.mxu0 %v12
    %140 = vmatmul.f32.gmra.mxu0 %v119
    %v141 = vpop.f32.mrf.mxu0
    %v142 = vadd.f32 0.0, %v141
    %143 = vmatmul.f32.gmra.mxu0 %v122
    %v144 = vpop.f32.mrf.mxu0
    %v145 = vadd.f32 0.0, %v144
    %146 = vdwg.mxu0
    %s147 = scalar_lea.vmem [#allocation2], 16
    %148 = vst.msk [vmem:[%s147] sm:$0xff] %vm84, %v142
    %149 = vst.msk [vmem:[%s147 + $0x8] sm:$0xff] %vm84, %v145
    // Predicated region
    $region10: #{tpu_custom_call.1} parent=1 // pred_check
      _
    $region11: #{tpu_custom_call.1} parent=1 // pred_check_branch
      %151 = sbr.rel (0) target = $region13
    $region12: #{tpu_custom_call.1} parent=1 // pred_region
      %153 = vsyncadd [#allocation3], 0
      %s154 = sshll.u32 [#allocation2], 4
      %s155 = int_to_ptr.vmem [resolvable:$true] %s154
      %s156 = sshll.u32 %s2, 4
      %s157 = int_to_ptr.hbm [resolvable:$true] %s156
      %162 = dma.vmem_to_hbm [thread:$0]  %s155, 512, %s157, [#allocation3], 128, 128, 8
    $region13: #{tpu_custom_call.1} parent=1 // pred_fallthru
      _
    // Predicated region
    $region14: #{tpu_custom_call.1} parent=1 // pred_check
      _
    $region15: #{tpu_custom_call.1} parent=1 // pred_check_branch
      %164 = sbr.rel (0) target = $region17
    $region16: #{tpu_custom_call.1} parent=1 // pred_region
      %166 = dma.done [#allocation3], 512
    $region17: #{tpu_custom_call.1} parent=1 // pred_fallthru
      _
    %167 = vsyncpa [#allocation3], 1

</llo_original>
